<compile_context>
chip_gen: v5e
topology: v5e:2x2
jax: 0.10.0
libtpu: 0.0.40
codegen_flags: <defaults>
</compile_context>

<pallas_src>
import functools
import math

import jax
import jax.numpy as jnp
from jax.experimental import pallas as pl
from jax.experimental.pallas import tpu as pltpu


def _pick_tile(T, preferred):
    """Largest MXU/VMEM-friendly tile that divides T (falls back to T itself)."""
    for t in preferred:
        if t <= T and T % t == 0:
            return t
    return T


# --------------------------------------------------------------------------- #
# 1) Fused QKV projection: (tm, C) @ (C, 3C) -> q, k, v in (B, T, C) layout.   #
# --------------------------------------------------------------------------- #
def _qkv_kernel(x_ref, w_ref, b_ref, q_ref, k_ref, v_ref, *, n_embd):
    x = x_ref[0]                                            # (tm, C), native dtype
    qkv = jnp.dot(x, w_ref[...],
                  preferred_element_type=jnp.float32) + b_ref[...]   # (tm, 3C) f32
    q_ref[0] = qkv[:, :n_embd].astype(q_ref.dtype)
    k_ref[0] = qkv[:, n_embd:2 * n_embd].astype(k_ref.dtype)
    v_ref[0] = qkv[:, 2 * n_embd:].astype(v_ref.dtype)


# --------------------------------------------------------------------------- #
# 2) Flash attention (all heads per step, online softmax, causal tile skip)    #
#    with the output projection fused into the finalize step.                  #
# --------------------------------------------------------------------------- #
def _flash_proj_kernel(q_ref, k_ref, v_ref, wp_ref, bp_ref, o_ref,
                       m_ref, l_ref, acc_ref, *,
                       n_head, head_dim, block_q, block_k):
    qi = pl.program_id(1)
    ki = pl.program_id(2)

    @pl.when(ki == 0)
    def _init():
        m_ref[...] = jnp.full(m_ref.shape, -jnp.inf, jnp.float32)
        l_ref[...] = jnp.zeros(l_ref.shape, jnp.float32)
        acc_ref[...] = jnp.zeros(acc_ref.shape, jnp.float32)

    def _update(apply_mask):
        q_all = q_ref[0]                                    # (tq, C)
        k_all = k_ref[0]                                    # (tk, C)
        v_all = v_ref[0]                                    # (tk, C)
        if apply_mask:  # trace-time flag: the mask is only built on diagonal tiles
            row = qi * block_q + jax.lax.broadcasted_iota(
                jnp.int32, (block_q, block_k), 0)
            col = ki * block_k + jax.lax.broadcasted_iota(
                jnp.int32, (block_q, block_k), 1)
            causal = col <= row
        for h in range(n_head):                             # unrolled at trace time
            lo = h * head_dim
            hi = lo + head_dim
            q = q_all[:, lo:hi]                             # (tq, hd)
            k = k_all[:, lo:hi]                             # (tk, hd)
            v = v_all[:, lo:hi]                             # (tk, hd)
            # q @ k^T without an in-kernel transpose (scale already folded into q).
            s = jax.lax.dot_general(
                q, k, (((1,), (1,)), ((), ())),
                preferred_element_type=jnp.float32)         # (tq, tk) f32
            if apply_mask:
                s = jnp.where(causal, s, -10000000000.0)
            m_prev = m_ref[h]                               # (tq, 1)
            m_new = jnp.maximum(m_prev, jnp.max(s, axis=-1, keepdims=True))
            alpha = jnp.exp(m_prev - m_new)
            p = jnp.exp(s - m_new)
            l_ref[h] = alpha * l_ref[h] + jnp.sum(p, axis=-1, keepdims=True)
            acc_ref[:, lo:hi] = alpha * acc_ref[:, lo:hi] + jnp.dot(
                p.astype(v.dtype), v, preferred_element_type=jnp.float32)
            m_ref[h] = m_new

    # kv tiles strictly below the diagonal: no mask needed.
    @pl.when(ki < qi)
    def _inner():
        _update(apply_mask=False)

    # Diagonal tile: masked update, then normalize + fused output projection.
    # Tiles strictly above the diagonal (ki > qi) do nothing at all (and, thanks
    # to the clamped K/V index_map, also issue no DMA).
    @pl.when(ki == qi)
    def _diag_and_finalize():
        _update(apply_mask=True)
        for h in range(n_head):
            lo = h * head_dim
            hi = lo + head_dim
            inv = pl.reciprocal(l_ref[h], approx=False)     # exact, once per q tile
            acc_ref[:, lo:hi] = acc_ref[:, lo:hi] * inv
        y = acc_ref[...].astype(wp_ref.dtype)               # (tq, C), heads merged
        o_ref[0] = (jnp.dot(y, wp_ref[...], preferred_element_type=jnp.float32)
                    + bp_ref[...]).astype(o_ref.dtype)


def causal_self_attention(x, params, n_head):
    B, T, C = x.shape
    assert C % n_head == 0
    hd = C // n_head
    wq, bq, wk, bk, wv, bv, wp, bp = params

    scale = 1.0 / math.sqrt(hd)
    # One-time wrapper-side packing: PyTorch (out,in) -> input-major slabs,
    # with the softmax scale folded into the Q weights/bias.
    w_qkv = jnp.concatenate([wq.T * scale, wk.T, wv.T], axis=1).astype(x.dtype)  # (C, 3C)
    b_qkv = jnp.concatenate(
        [bq.reshape(-1) * scale, bk.reshape(-1), bv.reshape(-1)]
    ).reshape(1, 3 * C).astype(jnp.float32)                                       # (1, 3C)
    w_proj = wp.T.astype(x.dtype)                                                 # (C, C)
    b_proj = bp.reshape(1, C).astype(jnp.float32)                                 # (1, C)

    tm = _pick_tile(T, (512, 256, 128, 64, 32, 16, 8))   # row tile, QKV projection
    tq = tk = _pick_tile(T, (256, 128, 64, 32, 16, 8))   # q / kv tiles (equal -> simple diag test)

    # ---- 1) fused QKV projection (lane-dense (B, T, C) outputs) -------------
    q, k, v = pl.pallas_call(
        functools.partial(_qkv_kernel, n_embd=C),
        out_shape=(jax.ShapeDtypeStruct((B, T, C), x.dtype),) * 3,
        grid_spec=pltpu.PrefetchScalarGridSpec(
            num_scalar_prefetch=0,
            grid=(B, T // tm),
            in_specs=[
                pl.BlockSpec((1, tm, C), lambda b, i: (b, i, 0)),
                pl.BlockSpec((C, 3 * C), lambda b, i: (0, 0)),
                pl.BlockSpec((1, 3 * C), lambda b, i: (0, 0)),
            ],
            out_specs=[pl.BlockSpec((1, tm, C), lambda b, i: (b, i, 0))] * 3,
        ),
        compiler_params=pltpu.CompilerParams(
            dimension_semantics=("parallel", "parallel")),
    )(x, w_qkv, b_qkv)

    # ---- 2) flash attention + fused output projection ------------------------
    out = pl.pallas_call(
        functools.partial(_flash_proj_kernel, n_head=n_head, head_dim=hd,
                          block_q=tq, block_k=tk),
        out_shape=jax.ShapeDtypeStruct((B, T, C), x.dtype),
        grid_spec=pltpu.PrefetchScalarGridSpec(
            num_scalar_prefetch=0,
            grid=(B, T // tq, T // tk),
            in_specs=[
                pl.BlockSpec((1, tq, C), lambda b, i, j: (b, i, 0)),
                # Causal DMA clamp: tiles above the diagonal are never computed,
                # so point them at the (already-resident) diagonal block -> no DMA.
                pl.BlockSpec((1, tk, C),
                             lambda b, i, j: (b, jnp.minimum(j, i), 0)),
                pl.BlockSpec((1, tk, C),
                             lambda b, i, j: (b, jnp.minimum(j, i), 0)),
                pl.BlockSpec((C, C), lambda b, i, j: (0, 0)),   # proj weight, resident
                pl.BlockSpec((1, C), lambda b, i, j: (0, 0)),   # proj bias, resident
            ],
            out_specs=pl.BlockSpec((1, tq, C), lambda b, i, j: (b, i, 0)),
            scratch_shapes=[
                pltpu.VMEM((n_head, tq, 1), jnp.float32),   # running max m (per head)
                pltpu.VMEM((n_head, tq, 1), jnp.float32),   # running denom l (per head)
                pltpu.VMEM((tq, C), jnp.float32),           # output accumulator (heads merged)
            ],
        ),
        compiler_params=pltpu.CompilerParams(
            dimension_semantics=("parallel", "parallel", "arbitrary")),
    )(q, k, v, w_proj, b_proj)
    return out


def _reference(x, params, n_head):
    """Plain-JAX replica of the PyTorch forward (dropout = identity)."""
    wq, bq, wk, bk, wv, bv, wp, bp = params
    B, T, C = x.shape
    hd = C // n_head
    q = (x @ wq.T + bq).reshape(B, T, n_head, hd).transpose(0, 2, 1, 3)
    k = (x @ wk.T + bk).reshape(B, T, n_head, hd).transpose(0, 2, 1, 3)
    v = (x @ wv.T + bv).reshape(B, T, n_head, hd).transpose(0, 2, 1, 3)
    att = (q @ k.transpose(0, 1, 3, 2)) * (1.0 / math.sqrt(hd))
    mask = jnp.tril(jnp.ones((T, T)))[None, None]
    att = jnp.where(mask == 0, -10000000000.0, att)
    att = jax.nn.softmax(att, axis=-1)
    y = (att @ v).transpose(0, 2, 1, 3).reshape(B, T, C)
    return y @ wp.T + bp


if __name__ == "__main__":
    def _run_case(key, B, T, C, n_head, tol):
        ks = jax.random.split(key, 9)
        bound = 1.0 / math.sqrt(C)

        def lin(kw, kb):
            w = jax.random.uniform(kw, (C, C), jnp.float32, -bound, bound)
            b = jax.random.uniform(kb, (1, C), jnp.float32, -bound, bound)
            return w, b

        wq, bq = lin(ks[0], ks[1])
        wk, bk = lin(ks[2], ks[3])
        wv, bv = lin(ks[4], ks[5])
        wp, bp = lin(ks[6], ks[7])
        params = (wq, bq, wk, bk, wv, bv, wp, bp)
        x = jax.random.normal(ks[8], (B, T, C), jnp.float32)

        out = jax.block_until_ready(causal_self_attention(x, params, n_head))
        ref = _reference(x, params, n_head)
        assert out.shape == (B, T, C)
        assert jnp.allclose(out, ref, atol=tol, rtol=tol), \
            f"mismatch vs reference (B={B}, T={T}, C={C}, H={n_head})"

    key = jax.random.PRNGKey(0)
    k1, k2 = jax.random.split(key)
    # Small config matching the module spec (n_embd=32, n_head=4, T=8, B=2).
    _run_case(k1, B=2, T=8, C=32, n_head=4, tol=2e-3)
    # Larger config: multi-tile online softmax, causal block/DMA skipping.
    _run_case(k2, B=2, T=512, C=128, n_head=4, tol=2e-3)

    print("KERNEL_OK")
</pallas_src>

<mosaic_0001>
module attributes {stable_mosaic.version = 11 : i64} {
  func.func @_qkv_kernel(%arg0: i32, %arg1: i32, %arg2: memref<1x8x32xf32, #tpu.memory_space<vmem>>, %arg3: memref<32x96xf32, #tpu.memory_space<vmem>>, %arg4: memref<1x96xf32, #tpu.memory_space<vmem>>, %arg5: memref<1x8x32xf32, #tpu.memory_space<vmem>>, %arg6: memref<1x8x32xf32, #tpu.memory_space<vmem>>, %arg7: memref<1x8x32xf32, #tpu.memory_space<vmem>>) attributes {dimension_semantics = [#tpu.dimension_semantics<parallel>, #tpu.dimension_semantics<parallel>], iteration_bounds = array<i64: 2, 1>, scalar_prefetch = 0 : i64, scratch_operands = 0 : i64, tpu.core_type = #tpu.core_type<tc>, window_params = [{transform_indices = @transform_0, window_bounds = array<i64: 1, 8, 32>}, {pipeline_mode = #tpu.pipeline_mode<synchronous>, transform_indices = @transform_1, window_bounds = array<i64: 32, 96>}, {pipeline_mode = #tpu.pipeline_mode<synchronous>, transform_indices = @transform_2, window_bounds = array<i64: 1, 96>}, {transform_indices = @transform_3, window_bounds = array<i64: 1, 8, 32>}, {transform_indices = @transform_4, window_bounds = array<i64: 1, 8, 32>}, {transform_indices = @transform_5, window_bounds = array<i64: 1, 8, 32>}]} {
    %c0 = arith.constant 0 : index
    %c0_0 = arith.constant 0 : index
    %c0_1 = arith.constant 0 : index
    %0 = vector.load %arg2[%c0, %c0_0, %c0_1] : memref<1x8x32xf32, #tpu.memory_space<vmem>>, vector<1x8x32xf32>
    %1 = vector.shape_cast %0 : vector<1x8x32xf32> to vector<8x32xf32>
    %c0_2 = arith.constant 0 : index
    %c0_3 = arith.constant 0 : index
    %2 = vector.load %arg3[%c0_2, %c0_3] : memref<32x96xf32, #tpu.memory_space<vmem>>, vector<32x96xf32>
    %cst = arith.constant dense<0.000000e+00> : vector<8x96xf32>
    %3 = tpu.matmul %1, %2, %cst {dimension_numbers = #tpu.dot_dimension_numbers<[1], [0], [0], [1], [0, 0, 1, 1], [], []>} : vector<8x32xf32>, vector<32x96xf32>, vector<8x96xf32> -> vector<8x96xf32>
    %c0_4 = arith.constant 0 : index
    %c0_5 = arith.constant 0 : index
    %4 = vector.load %arg4[%c0_4, %c0_5] : memref<1x96xf32, #tpu.memory_space<vmem>>, vector<1x96xf32>
    %5 = vector.broadcast %4 : vector<1x96xf32> to vector<8x96xf32>
    %6 = arith.addf %3, %5 : vector<8x96xf32>
    %7 = vector.extract_strided_slice %6 {offsets = [0, 0], sizes = [8, 32], strides = [1, 1]} : vector<8x96xf32> to vector<8x32xf32>
    %c0_6 = arith.constant 0 : index
    %c0_7 = arith.constant 0 : index
    %c0_8 = arith.constant 0 : index
    %8 = vector.load %arg5[%c0_6, %c0_7, %c0_8] : memref<1x8x32xf32, #tpu.memory_space<vmem>>, vector<1x8x32xf32>
    %9 = vector.shape_cast %8 : vector<1x8x32xf32> to vector<8x32xf32>
    %10 = vector.shape_cast %7 : vector<8x32xf32> to vector<1x8x32xf32>
    tpu.vector_store %arg5[%c0_6, %c0_7, %c0_8], %10 {strides = array<i32>} : memref<1x8x32xf32, #tpu.memory_space<vmem>>, vector<1x8x32xf32>,
    %11 = vector.extract_strided_slice %6 {offsets = [0, 32], sizes = [8, 32], strides = [1, 1]} : vector<8x96xf32> to vector<8x32xf32>
    %c0_9 = arith.constant 0 : index
    %c0_10 = arith.constant 0 : index
    %c0_11 = arith.constant 0 : index
    %12 = vector.load %arg6[%c0_9, %c0_10, %c0_11] : memref<1x8x32xf32, #tpu.memory_space<vmem>>, vector<1x8x32xf32>
    %13 = vector.shape_cast %12 : vector<1x8x32xf32> to vector<8x32xf32>
    %14 = vector.shape_cast %11 : vector<8x32xf32> to vector<1x8x32xf32>
    tpu.vector_store %arg6[%c0_9, %c0_10, %c0_11], %14 {strides = array<i32>} : memref<1x8x32xf32, #tpu.memory_space<vmem>>, vector<1x8x32xf32>,
    %15 = vector.extract_strided_slice %6 {offsets = [0, 64], sizes = [8, 32], strides = [1, 1]} : vector<8x96xf32> to vector<8x32xf32>
    %c0_12 = arith.constant 0 : index
    %c0_13 = arith.constant 0 : index
    %c0_14 = arith.constant 0 : index
    %16 = vector.load %arg7[%c0_12, %c0_13, %c0_14] : memref<1x8x32xf32, #tpu.memory_space<vmem>>, vector<1x8x32xf32>
    %17 = vector.shape_cast %16 : vector<1x8x32xf32> to vector<8x32xf32>
    %18 = vector.shape_cast %15 : vector<8x32xf32> to vector<1x8x32xf32>
    tpu.vector_store %arg7[%c0_12, %c0_13, %c0_14], %18 {strides = array<i32>} : memref<1x8x32xf32, #tpu.memory_space<vmem>>, vector<1x8x32xf32>,
    return
  }
  func.func @transform_0(%arg0: i32, %arg1: i32) -> (i32, i32, i32) {
    %c0_i32 = arith.constant 0 : i32
    %c0_i32_0 = arith.constant 0 : i32
    return %arg0, %arg1, %c0_i32 : i32, i32, i32
  }
  func.func @transform_1(%arg0: i32, %arg1: i32) -> (i32, i32) {
    %c0_i32 = arith.constant 0 : i32
    %c0_i32_0 = arith.constant 0 : i32
    %c0_i32_1 = arith.constant 0 : i32
    return %c0_i32, %c0_i32_0 : i32, i32
  }
  func.func @transform_2(%arg0: i32, %arg1: i32) -> (i32, i32) {
    %c0_i32 = arith.constant 0 : i32
    %c0_i32_0 = arith.constant 0 : i32
    %c0_i32_1 = arith.constant 0 : i32
    return %c0_i32, %c0_i32_0 : i32, i32
  }
  func.func @transform_3(%arg0: i32, %arg1: i32) -> (i32, i32, i32) {
    %c0_i32 = arith.constant 0 : i32
    %c0_i32_0 = arith.constant 0 : i32
    return %arg0, %arg1, %c0_i32 : i32, i32, i32
  }
  func.func @transform_4(%arg0: i32, %arg1: i32) -> (i32, i32, i32) {
    %c0_i32 = arith.constant 0 : i32
    %c0_i32_0 = arith.constant 0 : i32
    return %arg0, %arg1, %c0_i32 : i32, i32, i32
  }
  func.func @transform_5(%arg0: i32, %arg1: i32) -> (i32, i32, i32) {
    %c0_i32 = arith.constant 0 : i32
    %c0_i32_0 = arith.constant 0 : i32
    return %arg0, %arg1, %c0_i32 : i32, i32, i32
  }
}

</mosaic_0001>

<llo_original>
// kernel: tpu_custom_call.1
$region0: #{tpu_custom_call.1}
  #allocation0 [shape = 'u32[]', space=smem, size = 0x4, offset = 0x4, fixed_abs, tag = 'smem constant byte address 0x4 - core index']
  #allocation1 [shape = 'u32[72,128]{1,0:T(1,128)}', space=vmem, size = 0x9000, scoped, tag = 'internal scratch']
  %s0 = inlined_call_operand.hbm [shape: f32[2,8,32], index: 0, kind: input, shape index: {}]
  %s1 = inlined_call_operand.hbm [shape: f32[32,96], index: 1, kind: input, shape index: {}]
  %s2 = inlined_call_operand.vmem [shape: f32[1,96], index: 2, kind: input, shape index: {}]
  %s3 = inlined_call_operand.hbm [shape: f32[2,8,32], index: 3, kind: output, shape index: {0}]
  %s4 = inlined_call_operand.hbm [shape: f32[2,8,32], index: 4, kind: output, shape index: {1}]
  %s5 = inlined_call_operand.hbm [shape: f32[2,8,32], index: 5, kind: output, shape index: {2}]
  %6 = xla_tuple %s3, %s4, %s5
  %s7 = sld [smem:[#allocation0]]
  $region69: #{tpu_custom_call.1} parent=0
    _
  %s9 = ssub.s32 1, %s7
  %s10 = scalar_select 0, %s9, %s7
  $region1: #{tpu_custom_call.1} parent=0
    #allocation2 [shape = 'u8[8192]{0}', space=vmem, size = 0x2000, scoped, tag = 'input window, operand 0']
    #allocation3 [shape = 's32[2]{0}', space=sflag, size = 0x8, scoped, tag = 'scoped memory for tpu_custom_call.1']
    #allocation4 [shape = 's32[2]{0}', space=sflag, size = 0x8, scoped, tag = 'scoped memory for tpu_custom_call.1']
    #allocation5 [shape = 'u8[16384]{0}', space=vmem, size = 0x4000, scoped, tag = 'input window, operand 1, single buffered']
    #allocation6 [shape = 's32[1]{0}', space=sflag, size = 0x4, scoped, tag = 'scoped memory for tpu_custom_call.1']
    #allocation7 [shape = 'u8[8192]{0}', space=vmem, size = 0x2000, scoped, tag = 'output window, operand 0']
    #allocation8 [shape = 'u8[8192]{0}', space=vmem, size = 0x2000, scoped, tag = 'output window, operand 1']
    #allocation9 [shape = 's32[2]{0}', space=sflag, size = 0x8, scoped, tag = 'scoped memory for tpu_custom_call.1']
    #allocation10 [shape = 'u8[8192]{0}', space=vmem, size = 0x2000, scoped, tag = 'output window, operand 2']
    %11 = vsyncpa [#allocation3], 0
    %s12 = scalar_lea.sflag [#allocation3], 1
    %13 = vsyncpa %s12, 0
    %14 = vsyncpa [#allocation6], 0
    %15 = vsyncpa [#allocation4], 0
    %s16 = scalar_lea.sflag [#allocation4], 1
    %17 = vsyncpa %s16, 0
    %18 = vsyncpa [#allocation9], 0
    %s19 = scalar_lea.sflag [#allocation9], 1
    %20 = vsyncpa %s19, 0
    loop: start=0, step=1, limit=4
    $region2: #{tpu_custom_call.1} parent=1 // loop_pre_header
      _
    $region3: #{tpu_custom_call.1} parent=1 // loop_header
      %s22 = sphi 0, %s26
      %p23 = scmp.ge.s32.totalorder %s22, 4
      %s29 = sphi 0, %s41
      %s30 = sphi 0, %s37
      %s31 = sphi 0, %s29
      %s32 = sphi 0, %s30
      %s33 = sphi 0, %s31
      %s34 = sphi 0, %s32
      %s46 = sphi 0, %s48
      %s49 = sphi 0, %s46
      %s50 = sphi 0, %s49
      %s66 = sphi 0, %s50
      %s70 = sphi 0, %s70
      %s72 = sphi 0, %s70
      %s73 = sphi 0, %s72
      %s87 = sphi 0, %s73
      %s91 = sphi 0, %s91
      %s93 = sphi 0, %s91
      %s94 = sphi 0, %s93
      %s108 = sphi 0, %s94
      %s116 = sphi 0, %s118
      %s119 = sphi 0, %s116
      %s120 = sphi 0, %s119
      %s136 = sphi 0, %s120
      %s144 = sphi 0, %s146
      %s147 = sphi 0, %s144
      %s148 = sphi 0, %s147
      %s164 = sphi 0, %s148
      %s172 = sphi 0, %s174
      %s175 = sphi 0, %s172
      %s176 = sphi 0, %s175
      %s192 = sphi 0, %s176
    $region4: #{tpu_custom_call.1} parent=1 // loop_header_branch
      %25 = sbr.rel (%p23) target = $region8
    $region5: #{tpu_custom_call.1} parent=1 // loop_body
      %s27 = ssub.s32 %s22, 1
      %s28 = ssub.s32 %s22, 2
      %s35 = sadd.s32 1, %s30
      %p36 = scmp.ge.s32.totalorder %s35, 1
      %s37 = scalar_select %p36, 0, %s35
      %s38 = sadd.s32 1, %s29
      %s39 = scalar_select %p36, %s38, %s29
      %p40 = scmp.ge.s32.totalorder %s39, 2
      %s41 = scalar_select %p40, 0, %s39
      %s42 = ssub.s32 %s29, %s41
      %s43 = ssub.s32 %s30, %s37
      %s44 = sor.u32 %s42, %s43
      %p45 = scmp.eq.s32.totalorder %s44, 0
      %s47 = sadd.s32 %s46, 1
      %s48 = scalar_select %p45, %s46, %s47
      %p51 = pneg %p45
      %p52 = scmp.eq.s32.totalorder %s22, 1
      %p53 = por %p51, %p52
      %p54 = scmp.ne.s32.totalorder %s46, %s49
      %p55 = scmp.eq.s32.totalorder %s22, 0
      %p56 = por %p54, %p55
      %p57 = scmp.ne.s32.totalorder %s46, %s49
      %p58 = scmp.eq.s32.totalorder %s27, 1
      %p59 = por %p57, %p58
      %p60 = scmp.ne.s32.totalorder %s49, %s50
      %p61 = scmp.eq.s32.totalorder %s27, 0
      %p62 = por %p60, %p61
      %p63 = scmp.ne.s32.totalorder %s49, %s50
      %p64 = scmp.eq.s32.totalorder %s28, 1
      %p65 = por %p63, %p64
      %p67 = scmp.ne.s32.totalorder %s50, %s66
      %p68 = scmp.eq.s32.totalorder %s28, 0
      %p69 = por %p67, %p68
      %s71 = sadd.s32 %s70, 1
      %p74 = scmp.eq.s32.totalorder %s22, 1
      %p75 = scmp.ne.s32.totalorder %s70, %s72
      %p76 = scmp.eq.s32.totalorder %s22, 0
      %p77 = por %p75, %p76
      %p78 = scmp.ne.s32.totalorder %s70, %s72
      %p79 = scmp.eq.s32.totalorder %s27, 1
      %p80 = por %p78, %p79
      %p81 = scmp.ne.s32.totalorder %s72, %s73
      %p82 = scmp.eq.s32.totalorder %s27, 0
      %p83 = por %p81, %p82
      %p84 = scmp.ne.s32.totalorder %s72, %s73
      %p85 = scmp.eq.s32.totalorder %s28, 1
      %p86 = por %p84, %p85
      %p88 = scmp.ne.s32.totalorder %s73, %s87
      %p89 = scmp.eq.s32.totalorder %s28, 0
      %p90 = por %p88, %p89
      %s92 = sadd.s32 %s91, 1
      %p95 = scmp.eq.s32.totalorder %s22, 1
      %p96 = scmp.ne.s32.totalorder %s91, %s93
      %p97 = scmp.eq.s32.totalorder %s22, 0
      %p98 = por %p96, %p97
      %p99 = scmp.ne.s32.totalorder %s91, %s93
      %p100 = scmp.eq.s32.totalorder %s27, 1
      %p101 = por %p99, %p100
      %p102 = scmp.ne.s32.totalorder %s93, %s94
      %p103 = scmp.eq.s32.totalorder %s27, 0
      %p104 = por %p102, %p103
      %p105 = scmp.ne.s32.totalorder %s93, %s94
      %p106 = scmp.eq.s32.totalorder %s28, 1
      %p107 = por %p105, %p106
      %p109 = scmp.ne.s32.totalorder %s94, %s108
      %p110 = scmp.eq.s32.totalorder %s28, 0
      %p111 = por %p109, %p110
      %s112 = ssub.s32 %s29, %s41
      %s113 = ssub.s32 %s30, %s37
      %s114 = sor.u32 %s112, %s113
      %p115 = scmp.eq.s32.totalorder %s114, 0
      %s117 = sadd.s32 %s116, 1
      %s118 = scalar_select %p115, %s116, %s117
      %p121 = pneg %p115
      %p122 = scmp.eq.s32.totalorder %s22, 1
      %p123 = por %p121, %p122
      %p124 = scmp.ne.s32.totalorder %s116, %s119
      %p125 = scmp.eq.s32.totalorder %s22, 0
      %p126 = por %p124, %p125
      %p127 = scmp.ne.s32.totalorder %s116, %s119
      %p128 = scmp.eq.s32.totalorder %s27, 1
      %p129 = por %p127, %p128
      %p130 = scmp.ne.s32.totalorder %s119, %s120
      %p131 = scmp.eq.s32.totalorder %s27, 0
      %p132 = por %p130, %p131
      %p133 = scmp.ne.s32.totalorder %s119, %s120
      %p134 = scmp.eq.s32.totalorder %s28, 1
      %p135 = por %p133, %p134
      %p137 = scmp.ne.s32.totalorder %s120, %s136
      %p138 = scmp.eq.s32.totalorder %s28, 0
      %p139 = por %p137, %p138
      %s140 = ssub.s32 %s29, %s41
      %s141 = ssub.s32 %s30, %s37
      %s142 = sor.u32 %s140, %s141
      %p143 = scmp.eq.s32.totalorder %s142, 0
      %s145 = sadd.s32 %s144, 1
      %s146 = scalar_select %p143, %s144, %s145
      %p149 = pneg %p143
      %p150 = scmp.eq.s32.totalorder %s22, 1
      %p151 = por %p149, %p150
      %p152 = scmp.ne.s32.totalorder %s144, %s147
      %p153 = scmp.eq.s32.totalorder %s22, 0
      %p154 = por %p152, %p153
      %p155 = scmp.ne.s32.totalorder %s144, %s147
      %p156 = scmp.eq.s32.totalorder %s27, 1
      %p157 = por %p155, %p156
      %p158 = scmp.ne.s32.totalorder %s147, %s148
      %p159 = scmp.eq.s32.totalorder %s27, 0
      %p160 = por %p158, %p159
      %p161 = scmp.ne.s32.totalorder %s147, %s148
      %p162 = scmp.eq.s32.totalorder %s28, 1
      %p163 = por %p161, %p162
      %p165 = scmp.ne.s32.totalorder %s148, %s164
      %p166 = scmp.eq.s32.totalorder %s28, 0
      %p167 = por %p165, %p166
      %s168 = ssub.s32 %s29, %s41
      %s169 = ssub.s32 %s30, %s37
      %s170 = sor.u32 %s168, %s169
      %p171 = scmp.eq.s32.totalorder %s170, 0
      %s173 = sadd.s32 %s172, 1
      %s174 = scalar_select %p171, %s172, %s173
      %p177 = pneg %p171
      %p178 = scmp.eq.s32.totalorder %s22, 1
      %p179 = por %p177, %p178
      %p180 = scmp.ne.s32.totalorder %s172, %s175
      %p181 = scmp.eq.s32.totalorder %s22, 0
      %p182 = por %p180, %p181
      %p183 = scmp.ne.s32.totalorder %s172, %s175
      %p184 = scmp.eq.s32.totalorder %s27, 1
      %p185 = por %p183, %p184
      %p186 = scmp.ne.s32.totalorder %s175, %s176
      %p187 = scmp.eq.s32.totalorder %s27, 0
      %p188 = por %p186, %p187
      %p189 = scmp.ne.s32.totalorder %s175, %s176
      %p190 = scmp.eq.s32.totalorder %s28, 1
      %p191 = por %p189, %p190
      %p193 = scmp.ne.s32.totalorder %s176, %s192
      %p194 = scmp.eq.s32.totalorder %s28, 0
      %p195 = por %p193, %p194
      %p196 = scmp.le.s32.totalorder 1, %s22
      %p197 = scmp.lt.s32.totalorder %s22, 3
      %p198 = pnand %p196, %p197
      %p199 = pneg %p198
      // Predicated region
      $region9: #{tpu_custom_call.1} parent=5 // pred_check
        _
      $region10: #{tpu_custom_call.1} parent=5 // pred_check_branch
        %201 = sbr.rel (%p198) target = $region12
      $region11: #{tpu_custom_call.1} parent=5 // pred_region
        %s202 = ssub.s32 %s22, 1
        // Predicated region
        $region13: #{tpu_custom_call.1} parent=11 // pred_check
          %p203 = pneg %p83
        $region14: #{tpu_custom_call.1} parent=11 // pred_check_branch
          %205 = sbr.rel (%p203) target = $region16
        $region15: #{tpu_custom_call.1} parent=11 // pred_region
          %207 = vsyncadd [#allocation6], 0
          %s208 = sshll.u32 %s1, 4
          %s209 = int_to_ptr.hbm [resolvable:$true] %s208
          %s210 = sshll.u32 [#allocation5], 4
          %s211 = int_to_ptr.vmem [resolvable:$true] %s210
          %216 = dma.hbm_to_vmem [thread:$0]  %s209, 512, %s211, [#allocation6], 128, 128, 8
        $region16: #{tpu_custom_call.1} parent=11 // pred_fallthru
          _
        // Predicated region
        $region17: #{tpu_custom_call.1} parent=11 // pred_check
          %p217 = pneg %p104
        $region18: #{tpu_custom_call.1} parent=11 // pred_check_branch
          %219 = sbr.rel (%p217) target = $region20
        $region19: #{tpu_custom_call.1} parent=11 // pred_region
          _
        $region20: #{tpu_custom_call.1} parent=11 // pred_fallthru
          _
      $region12: #{tpu_custom_call.1} parent=5 // pred_fallthru
        _
      %p220 = scmp.lt.s32.totalorder %s22, 2
      // Predicated region
      $region21: #{tpu_custom_call.1} parent=5 // pred_check
        %p221 = pneg %p220
      $region22: #{tpu_custom_call.1} parent=5 // pred_check_branch
        %223 = sbr.rel (%p221) target = $region24
      $region23: #{tpu_custom_call.1} parent=5 // pred_region
        // Predicated region
        $region25: #{tpu_custom_call.1} parent=23 // pred_check
          %p224 = pneg %p56
        $region26: #{tpu_custom_call.1} parent=23 // pred_check_branch
          %226 = sbr.rel (%p224) target = $region28
        $region27: #{tpu_custom_call.1} parent=23 // pred_region
          %s227 = sand.u32 %s46, 1
          %s228 = scalar_lea.sflag [#allocation3], %s227
          %s229 = sand.u32 %s46, 1
          %s230 = smul.addr %s229, 8
          %s231 = scalar_lea.vmem [#allocation2], %s230
          %233 = vsyncadd %s228, 0
          %s234 = sadd.s32 %s30, %s29
          %s235 = smul.addr %s234, 8
          %s236 = scalar_lea.hbm %s0, %s235
          %s238 = sshll.u32 %s236, 4
          %s239 = int_to_ptr.hbm [resolvable:$true] %s238
          %s240 = sshll.u32 %s231, 4
          %s241 = int_to_ptr.vmem [resolvable:$true] %s240
          %243 = dma.hbm_to_vmem [thread:$0]  %s239, 128, %s241, %s228
        $region28: #{tpu_custom_call.1} parent=23 // pred_fallthru
          _
      $region24: #{tpu_custom_call.1} parent=5 // pred_fallthru
        _
      %p244 = scmp.le.s32.totalorder 1, %s22
      %p245 = scmp.lt.s32.totalorder %s22, 3
      %p246 = pnand %p244, %p245
      %p247 = pneg %p246
      // Predicated region
      $region29: #{tpu_custom_call.1} parent=5 // pred_check
        _
      $region30: #{tpu_custom_call.1} parent=5 // pred_check_branch
        %249 = sbr.rel (%p246) target = $region32
      $region31: #{tpu_custom_call.1} parent=5 // pred_region
        %s250 = ssub.s32 %s22, 1
        %s251 = sand.u32 %s49, 1
        %s252 = scalar_lea.sflag [#allocation3], %s251
        %s253 = sand.u32 %s49, 1
        %s254 = smul.addr %s253, 8
        %s255 = scalar_lea.vmem [#allocation2], %s254
        // Predicated region
        $region33: #{tpu_custom_call.1} parent=31 // pred_check
          %p256 = pneg %p62
        $region34: #{tpu_custom_call.1} parent=31 // pred_check_branch
          %258 = sbr.rel (%p256) target = $region36
        $region35: #{tpu_custom_call.1} parent=31 // pred_region
          %260 = dma.done %s252, 128
        $region36: #{tpu_custom_call.1} parent=31 // pred_fallthru
          _
        // Predicated region
        $region37: #{tpu_custom_call.1} parent=31 // pred_check
          %p261 = pneg %p83
        $region38: #{tpu_custom_call.1} parent=31 // pred_check_branch
          %263 = sbr.rel (%p261) target = $region40
        $region39: #{tpu_custom_call.1} parent=31 // pred_region
          %265 = dma.done [#allocation6], 512
        $region40: #{tpu_custom_call.1} parent=31 // pred_fallthru
          _
        %s266 = sand.u32 %s49, 1
        %s267 = scalar_lea.sflag [#allocation3], %s266
        %s268 = sand.u32 %s49, 1
        %s269 = smul.addr %s268, 8
        %s270 = scalar_lea.vmem [#allocation2], %s269
        %p271 = pneg %p62
        %p272 = pneg %p59
        %p273 = pneg %p83
        %p274 = pneg %p80
        %p275 = pneg %p104
        %p276 = pneg %p101
        %p277 = pneg %p132
        %p278 = pneg %p129
        %s279 = sand.u32 %s119, 1
        %s280 = scalar_lea.sflag [#allocation4], %s279
        %s281 = sand.u32 %s119, 1
        %s282 = smul.addr %s281, 8
        %s283 = scalar_lea.vmem [#allocation7], %s282
        %p284 = pneg %p160
        %p285 = pneg %p157
        %s286 = sand.u32 %s27, 1
        %s287 = scalar_lea.sflag [#allocation9], %s286
        %s288 = sand.u32 %s147, 1
        %s289 = smul.addr %s288, 8
        %s290 = scalar_lea.vmem [#allocation8], %s289
        %p291 = pneg %p188
        %p292 = pneg %p185
        %s293 = sand.u32 %s27, 1
        %s294 = scalar_lea.sflag [#allocation9], %s293
        %s295 = sand.u32 %s175, 1
        %s296 = smul.addr %s295, 8
        %s297 = scalar_lea.vmem [#allocation10], %s296
        %v298 = vld [vmem:[%s255] sm:$0xff]
        %v299 = vld [vmem:[#allocation5] sm:$0xff]
        %v300 = vld [vmem:[#allocation5 + $0x8] sm:$0xff]
        %v301 = vld [vmem:[#allocation5 + $0x10] sm:$0xff]
        %v302 = vld [vmem:[#allocation5 + $0x18] sm:$0xff]
        %v303 = vld [vmem:[%s2] sm:$0x1]
        %v305 = vperm.slane %v303, 0
        %vm307 = vcmask 261120
        %v309 = vsel %vm307, %v298, 0
        %311 = vmatpush.msra.mxu0 0.0
        %312 = vmatpush.msra.mxu0 0.0
        %313 = vmatpush.msra.mxu0 0.0
        %314 = vmatpush.msra.mxu0 0.0
        %315 = vmatpush.msra.mxu0 0.0
        %316 = vmatpush.msra.mxu0 0.0
        %317 = vmatpush.msra.mxu0 0.0
        %318 = vmatpush.msra.mxu0 0.0
        %319 = vmatpush.msra.mxu0 0.0
        %320 = vmatpush.msra.mxu0 0.0
        %321 = vmatpush.msra.mxu0 0.0
        %322 = vmatpush.msra.mxu0 0.0
        %323 = vmatpush.msra.mxu0 %v302
        %324 = vmatpush.msra.mxu0 %v301
        %325 = vmatpush.msra.mxu0 %v300
        %326 = vmatpush.msra.mxu0 %v299
        %327 = vmatmul.f32.gmra.mxu0 %v309
        %v328 = vpop.f32.mrf.mxu0
        %v329 = vadd.f32 %v305, %v328
        %330 = vdwg.mxu0
        %331 = vst.msk [vmem:[%s283] sm:$0xff] %vm307, %v329
        %333 = vrot.lane.b32.xlu0 %v329, 96
        %v334 = vpop.permute.xlu0 %333
        %336 = vst.msk [vmem:[%s290] sm:$0xff] %vm307, %v334
        %337 = vrot.lane.b32.xlu0 %v329, 64
        %v338 = vpop.permute.xlu0 %337
        %340 = vst.msk [vmem:[%s297] sm:$0xff] %vm307, %v338
        %s341 = sand.u32 %s119, 1
        %s342 = scalar_lea.sflag [#allocation4], %s341
        %s343 = sand.u32 %s119, 1
        %s344 = smul.addr %s343, 8
        %s345 = scalar_lea.vmem [#allocation7], %s344
        %s346 = sand.u32 %s27, 1
        %s347 = scalar_lea.sflag [#allocation9], %s346
        %s348 = sand.u32 %s147, 1
        %s349 = smul.addr %s348, 8
        %s350 = scalar_lea.vmem [#allocation8], %s349
        %s351 = sand.u32 %s27, 1
        %s352 = scalar_lea.sflag [#allocation9], %s351
        %s353 = sand.u32 %s175, 1
        %s354 = smul.addr %s353, 8
        %s355 = scalar_lea.vmem [#allocation10], %s354
        // Predicated region
        $region41: #{tpu_custom_call.1} parent=31 // pred_check
          %p356 = pneg %p129
        $region42: #{tpu_custom_call.1} parent=31 // pred_check_branch
          %358 = sbr.rel (%p356) target = $region44
        $region43: #{tpu_custom_call.1} parent=31 // pred_region
          %360 = vsyncadd %s342, 0
          %s361 = sadd.s32 %s32, %s31
          %s362 = smul.addr %s361, 8
          %s363 = scalar_lea.hbm %s3, %s362
          %s365 = sshll.u32 %s345, 4
          %s366 = int_to_ptr.vmem [resolvable:$true] %s365
          %s367 = sshll.u32 %s363, 4
          %s368 = int_to_ptr.hbm [resolvable:$true] %s367
          %370 = dma.vmem_to_hbm [thread:$0]  %s366, 128, %s368, %s342
        $region44: #{tpu_custom_call.1} parent=31 // pred_fallthru
          _
        // Predicated region
        $region45: #{tpu_custom_call.1} parent=31 // pred_check
          %p371 = pneg %p157
        $region46: #{tpu_custom_call.1} parent=31 // pred_check_branch
          %373 = sbr.rel (%p371) target = $region48
        $region47: #{tpu_custom_call.1} parent=31 // pred_region
          %375 = vsyncadd %s347, 0
          %s376 = sadd.s32 %s32, %s31
          %s377 = smul.addr %s376, 8
          %s378 = scalar_lea.hbm %s4, %s377
          %s380 = sshll.u32 %s350, 4
          %s381 = int_to_ptr.vmem [resolvable:$true] %s380
          %s382 = sshll.u32 %s378, 4
          %s383 = int_to_ptr.hbm [resolvable:$true] %s382
          %385 = dma.vmem_to_hbm [thread:$0]  %s381, 128, %s383, %s347
        $region48: #{tpu_custom_call.1} parent=31 // pred_fallthru
          _
        // Predicated region
        $region49: #{tpu_custom_call.1} parent=31 // pred_check
          %p386 = pneg %p185
        $region50: #{tpu_custom_call.1} parent=31 // pred_check_branch
          %388 = sbr.rel (%p386) target = $region52
        $region51: #{tpu_custom_call.1} parent=31 // pred_region
          %390 = vsyncadd %s352, 0
          %s391 = sadd.s32 %s32, %s31
          %s392 = smul.addr %s391, 8
          %s393 = scalar_lea.hbm %s5, %s392
          %s395 = sshll.u32 %s355, 4
          %s396 = int_to_ptr.vmem [resolvable:$true] %s395
          %s397 = sshll.u32 %s393, 4
          %s398 = int_to_ptr.hbm [resolvable:$true] %s397
          %400 = dma.vmem_to_hbm [thread:$0]  %s396, 128, %s398, %s352
        $region52: #{tpu_custom_call.1} parent=31 // pred_fallthru
          _
      $region32: #{tpu_custom_call.1} parent=5 // pred_fallthru
        _
      %p401 = scmp.le.s32.totalorder 2, %s22
      // Predicated region
      $region53: #{tpu_custom_call.1} parent=5 // pred_check
        %p402 = pneg %p401
      $region54: #{tpu_custom_call.1} parent=5 // pred_check_branch
        %404 = sbr.rel (%p402) target = $region56
      $region55: #{tpu_custom_call.1} parent=5 // pred_region
        %s405 = ssub.s32 %s22, 2
        // Predicated region
        $region57: #{tpu_custom_call.1} parent=55 // pred_check
          %p406 = pneg %p135
        $region58: #{tpu_custom_call.1} parent=55 // pred_check_branch
          %408 = sbr.rel (%p406) target = $region60
        $region59: #{tpu_custom_call.1} parent=55 // pred_region
          %s409 = sand.u32 %s120, 1
          %s410 = scalar_lea.sflag [#allocation4], %s409
          %s411 = sand.u32 %s120, 1
          %s412 = smul.addr %s411, 8
          %s413 = scalar_lea.vmem [#allocation7], %s412
          %415 = dma.done %s410, 128
        $region60: #{tpu_custom_call.1} parent=55 // pred_fallthru
          _
        // Predicated region
        $region61: #{tpu_custom_call.1} parent=55 // pred_check
          %p416 = pneg %p163
        $region62: #{tpu_custom_call.1} parent=55 // pred_check_branch
          %418 = sbr.rel (%p416) target = $region64
        $region63: #{tpu_custom_call.1} parent=55 // pred_region
          %s419 = sand.u32 %s28, 1
          %s420 = scalar_lea.sflag [#allocation9], %s419
          %s421 = sand.u32 %s148, 1
          %s422 = smul.addr %s421, 8
          %s423 = scalar_lea.vmem [#allocation8], %s422
          %425 = dma.done %s420, 128
        $region64: #{tpu_custom_call.1} parent=55 // pred_fallthru
          _
        // Predicated region
        $region65: #{tpu_custom_call.1} parent=55 // pred_check
          %p426 = pneg %p191
        $region66: #{tpu_custom_call.1} parent=55 // pred_check_branch
          %428 = sbr.rel (%p426) target = $region68
        $region67: #{tpu_custom_call.1} parent=55 // pred_region
          %s429 = sand.u32 %s28, 1
          %s430 = scalar_lea.sflag [#allocation9], %s429
          %s431 = sand.u32 %s176, 1
          %s432 = smul.addr %s431, 8
          %s433 = scalar_lea.vmem [#allocation10], %s432
          %435 = dma.done %s430, 128
        $region68: #{tpu_custom_call.1} parent=55 // pred_fallthru
          _
      $region56: #{tpu_custom_call.1} parent=5 // pred_fallthru
        _
    $region6: #{tpu_custom_call.1} parent=1 // loop_footer
      %s26 = sadd.s32 1, %s22
    $region7: #{tpu_custom_call.1} parent=1 // loop_footer_branch
      %21 = sbr.rel target = $region3
    $region8: #{tpu_custom_call.1} parent=1 // loop_exit
      _
    %436 = vsyncpa [#allocation3], 1
    %s437 = scalar_lea.sflag [#allocation3], 1
    %438 = vsyncpa %s437, 1
    %439 = vsyncpa [#allocation6], 1
    %440 = vsyncpa [#allocation4], 1
    %s441 = scalar_lea.sflag [#allocation4], 1
    %442 = vsyncpa %s441, 1
    %443 = vsyncpa [#allocation9], 1
    %s444 = scalar_lea.sflag [#allocation9], 1
    %445 = vsyncpa %s444, 1

</llo_original>
